<compile_context>
chip_gen: v7x
topology: tpu7x:2x2x1
jax: 0.10.0
libtpu: 0.0.40
codegen_flags: <defaults>
</compile_context>

<pallas_src>
import jax
import jax.numpy as jnp
from jax import lax
from jax.experimental import pallas as pl
from jax.experimental.pallas import tpu as pltpu


def _round_up(x, m):
    return (x + m - 1) // m * m


def _cdiv(a, b):
    return -(-a // b)


# --------------------------------------------------------------------------------------
# Kernel
# --------------------------------------------------------------------------------------
def embed_branch_kernel(x_ref, w1_ref, c1_ref, w2_ref, c2_ref, o_ref):
    """One row tile of: relu(x @ W1' + c1) -> relu(. @ W2' + c2) -> L2-normalize rows."""
    cdt = w1_ref.dtype
    # Cast the activation tile on the VPU (HBM read of x stays f32 — no wrapper pass).
    x = x_ref[...].astype(cdt)

    # ---- fc1: Linear (+ folded BN scale in W1', folded bias/shift in c1) + ReLU --------
    h1 = jnp.dot(x, w1_ref[...], preferred_element_type=jnp.float32)
    h1 = jnp.maximum(h1 + c1_ref[...], 0.0)

    # ---- fc2: same folding --------------------------------------------------------------
    h2 = jnp.dot(h1.astype(w2_ref.dtype), w2_ref[...], preferred_element_type=jnp.float32)
    h2 = jnp.maximum(h2 + c2_ref[...], 0.0)

    # ---- F.normalize(x, p=2, dim=1, eps=1e-12) ------------------------------------------
    # rsqrt issues on the EUP slot; the divide becomes a multiply.
    sumsq = jnp.sum(h2 * h2, axis=-1, keepdims=True)
    inv = lax.rsqrt(jnp.maximum(sumsq, 1e-24))  # == 1 / max(||h2||_2, 1e-12)
    o_ref[...] = (h2 * inv).astype(o_ref.dtype)


# --------------------------------------------------------------------------------------
# One-time parameter folding (hoisted out of the per-call path)
# --------------------------------------------------------------------------------------
def fold_embed_branch_params(w1, b1, g1, beta1, rm1, rv1,
                             w2, b2, g2, beta2, rm2, rv2,
                             *, eps=1e-5, compute_dtype=jnp.bfloat16):
    """Fold eval-mode BatchNorm1d into the Linear weights.

    w1: (F, E), w2: (E, E) already in (in, out) layout (i.e. PyTorch weight transposed).
    Returns (W1', c1, W2', c2): W* in `compute_dtype` (MXU inputs), shifts in f32.
    """
    a1 = g1 / jnp.sqrt(rv1 + eps)
    a2 = g2 / jnp.sqrt(rv2 + eps)
    w1f = (w1 * a1[None, :]).astype(compute_dtype)
    w2f = (w2 * a2[None, :]).astype(compute_dtype)
    c1 = ((b1 - rm1) * a1 + beta1).astype(jnp.float32).reshape(1, -1)
    c2 = ((b2 - rm2) * a2 + beta2).astype(jnp.float32).reshape(1, -1)
    return w1f, c1, w2f, c2


# --------------------------------------------------------------------------------------
# Per-call wrapper
# --------------------------------------------------------------------------------------
def _pick_row_tile(n, block_rows):
    """Adaptive 8-aligned row tile: minimal batch slack, >=2 steps for v7x's two TCs."""
    n8 = _round_up(max(n, 1), 8)
    steps = _cdiv(n8, block_rows)
    if n8 >= 16:
        steps = max(steps, 2)          # v7x: give both TensorCores at least one step
    tm = _round_up(_cdiv(n8, steps), 8)
    steps = _cdiv(n, tm)               # ragged last block handled by Pallas masking
    return tm, steps


def embed_branch_pallas(x, folded_params, *, block_rows=512):
    """EmbedBranch forward (eval mode). x: (N, F) float32 -> (N, E) float32, L2-normalized."""
    w1f, c1, w2f, c2 = folded_params
    n, f = x.shape
    f_w, e = w1f.shape
    assert f_w == f and w2f.shape == (e, e)

    tm, steps = _pick_row_tile(n, block_rows)

    # Resident-weight VMEM budget (worst case: everything double-buffered) must stay
    # comfortably under v7x's 64 MiB physical VMEM.
    wbytes = (w1f.size * w1f.dtype.itemsize + w2f.size * w2f.dtype.itemsize
              + (c1.size + c2.size) * 4)
    tbytes = tm * (f + e) * 4
    est_vmem = 2 * wbytes + 2 * tbytes + (1 << 20)
    # TODO(synk): for large E, add a K/N-tiled grid axis ("arbitrary") with an f32 VMEM
    # accumulator instead of keeping W1/W2 fully resident.
    assert est_vmem < 48 * 1024 * 1024, "resident weights too big for v7x VMEM; tile K/N"
    vmem_limit = None if est_vmem < 12 * 1024 * 1024 else min(2 * est_vmem, 64 * 1024 * 1024)

    return pl.pallas_call(
        embed_branch_kernel,
        out_shape=jax.ShapeDtypeStruct((n, e), jnp.float32),
        grid_spec=pl.GridSpec(
            grid=(steps,),
            in_specs=[
                # x row tile: last dim == full array dim (32), so no lane padding needed;
                # the ragged last block (if N % tm != 0) is masked by Pallas.
                pl.BlockSpec((tm, f), lambda i: (i, 0)),
                pl.BlockSpec((f, e), lambda i: (0, 0)),    # W1' (VMEM-resident across steps)
                pl.BlockSpec((1, e), lambda i: (0, 0)),    # c1
                pl.BlockSpec((e, e), lambda i: (0, 0)),    # W2' (VMEM-resident across steps)
                pl.BlockSpec((1, e), lambda i: (0, 0)),    # c2
            ],
            out_specs=pl.BlockSpec((tm, e), lambda i: (i, 0)),
        ),
        compiler_params=pltpu.CompilerParams(
            dimension_semantics=("parallel",),   # independent rows; shards across v7x's 2 TCs
            vmem_limit_bytes=vmem_limit,
        ),
    )(x, w1f, c1, w2f, c2)


# --------------------------------------------------------------------------------------
# Pure-JAX eval-mode reference (op-for-op with the PyTorch module)
# --------------------------------------------------------------------------------------
def _reference(x, w1, b1, g1, beta1, rm1, rv1, w2, b2, g2, beta2, rm2, rv2, eps=1e-5):
    h1 = x @ w1 + b1
    h1 = (h1 - rm1) / jnp.sqrt(rv1 + eps) * g1 + beta1
    h1 = jnp.maximum(h1, 0.0)
    h2 = h1 @ w2 + b2
    h2 = (h2 - rm2) / jnp.sqrt(rv2 + eps) * g2 + beta2
    h2 = jnp.maximum(h2, 0.0)
    norm = jnp.maximum(jnp.linalg.norm(h2, axis=1, keepdims=True), 1e-12)
    return h2 / norm


if __name__ == "__main__":
    feat_dim = 32
    embedding_dim = 32

    key = jax.random.PRNGKey(0)
    ks = jax.random.split(key, 14)

    # fc1 params (PyTorch Linear stores (out, in); transpose to (in, out) for x @ W).
    w1_t = jax.random.normal(ks[1], (embedding_dim, feat_dim), dtype=jnp.float32) * 0.1
    b1 = jax.random.normal(ks[2], (embedding_dim,), dtype=jnp.float32) * 0.1
    g1 = 1.0 + 0.1 * jax.random.normal(ks[3], (embedding_dim,), dtype=jnp.float32)
    beta1 = 0.1 * jax.random.normal(ks[4], (embedding_dim,), dtype=jnp.float32)
    rm1 = 0.1 * jax.random.normal(ks[5], (embedding_dim,), dtype=jnp.float32)
    rv1 = 0.5 + jax.random.uniform(ks[6], (embedding_dim,), dtype=jnp.float32)

    # fc2 params.
    w2_t = jax.random.normal(ks[7], (embedding_dim, embedding_dim), dtype=jnp.float32) * 0.1
    b2 = jax.random.normal(ks[8], (embedding_dim,), dtype=jnp.float32) * 0.1
    g2 = 1.0 + 0.1 * jax.random.normal(ks[9], (embedding_dim,), dtype=jnp.float32)
    beta2 = 0.1 * jax.random.normal(ks[10], (embedding_dim,), dtype=jnp.float32)
    rm2 = 0.1 * jax.random.normal(ks[11], (embedding_dim,), dtype=jnp.float32)
    rv2 = 0.5 + jax.random.uniform(ks[12], (embedding_dim,), dtype=jnp.float32)

    w1 = w1_t.T  # (feat_dim, embedding_dim)
    w2 = w2_t.T  # (embedding_dim, embedding_dim)
    raw = (w1, b1, g1, beta1, rm1, rv1, w2, b2, g2, beta2, rm2, rv2)

    # Fold/cast ONCE (hoisted out of the per-call path).
    params_f32 = fold_embed_branch_params(*raw, compute_dtype=jnp.float32)
    params_bf16 = fold_embed_branch_params(*raw, compute_dtype=jnp.bfloat16)

    x_small = jax.random.normal(ks[0], (8, feat_dim), dtype=jnp.float32)     # single grid step
    x_big = jax.random.normal(ks[13], (300, feat_dim), dtype=jnp.float32)    # ragged 2-step grid

    ref_small = _reference(x_small, *raw)
    ref_big = _reference(x_big, *raw)

    # f32 compute path: tight tolerance (single step + ragged multi-step grid w/ masked rows).
    out_small_f32 = jax.block_until_ready(embed_branch_pallas(x_small, params_f32))
    out_big_f32 = jax.block_until_ready(embed_branch_pallas(x_big, params_f32))
    assert out_small_f32.shape == (8, embedding_dim)
    assert out_big_f32.shape == (300, embedding_dim)
    assert jnp.allclose(out_small_f32, ref_small, atol=2e-5, rtol=2e-5), "f32 mismatch (small)"
    assert jnp.allclose(out_big_f32, ref_big, atol=2e-5, rtol=2e-5), "f32 mismatch (big)"

    # bf16 weights/activations (default fast path), f32 accumulation + f32 bias/normalize.
    out_small = jax.block_until_ready(embed_branch_pallas(x_small, params_bf16))
    out_big = jax.block_until_ready(embed_branch_pallas(x_big, params_bf16))
    assert out_small.shape == (8, embedding_dim)
    assert out_big.shape == (300, embedding_dim)
    assert jnp.allclose(out_small, ref_small, atol=1e-2, rtol=1e-2), "bf16 mismatch (small)"
    assert jnp.allclose(out_big, ref_big, atol=1e-2, rtol=1e-2), "bf16 mismatch (big)"

    print("KERNEL_OK")
</pallas_src>

<mosaic_0001>
module attributes {stable_mosaic.version = 11 : i64} {
  func.func @embed_branch_kernel(%arg0: i32, %arg1: memref<8x32xf32, #tpu.memory_space<vmem>>, %arg2: memref<32x32xf32, #tpu.memory_space<vmem>>, %arg3: memref<1x32xf32, #tpu.memory_space<vmem>>, %arg4: memref<32x32xf32, #tpu.memory_space<vmem>>, %arg5: memref<1x32xf32, #tpu.memory_space<vmem>>, %arg6: memref<8x32xf32, #tpu.memory_space<vmem>>) attributes {dimension_semantics = [#tpu.dimension_semantics<parallel>], iteration_bounds = array<i64: 1>, scalar_prefetch = 0 : i64, scratch_operands = 0 : i64, tpu.core_type = #tpu.core_type<tc>, window_params = [{transform_indices = @transform_0, window_bounds = array<i64: 8, 32>}, {pipeline_mode = #tpu.pipeline_mode<synchronous>, transform_indices = @transform_1, window_bounds = array<i64: 32, 32>}, {pipeline_mode = #tpu.pipeline_mode<synchronous>, transform_indices = @transform_2, window_bounds = array<i64: 1, 32>}, {pipeline_mode = #tpu.pipeline_mode<synchronous>, transform_indices = @transform_3, window_bounds = array<i64: 32, 32>}, {pipeline_mode = #tpu.pipeline_mode<synchronous>, transform_indices = @transform_4, window_bounds = array<i64: 1, 32>}, {transform_indices = @transform_5, window_bounds = array<i64: 8, 32>}]} {
    %c0 = arith.constant 0 : index
    %c0_0 = arith.constant 0 : index
    %0 = vector.load %arg1[%c0, %c0_0] : memref<8x32xf32, #tpu.memory_space<vmem>>, vector<8x32xf32>
    %c0_1 = arith.constant 0 : index
    %c0_2 = arith.constant 0 : index
    %1 = vector.load %arg2[%c0_1, %c0_2] : memref<32x32xf32, #tpu.memory_space<vmem>>, vector<32x32xf32>
    %cst = arith.constant dense<0.000000e+00> : vector<8x32xf32>
    %2 = tpu.matmul %0, %1, %cst {dimension_numbers = #tpu.dot_dimension_numbers<[1], [0], [0], [1], [0, 0, 1, 1], [], []>} : vector<8x32xf32>, vector<32x32xf32>, vector<8x32xf32> -> vector<8x32xf32>
    %c0_3 = arith.constant 0 : index
    %c0_4 = arith.constant 0 : index
    %3 = vector.load %arg3[%c0_3, %c0_4] : memref<1x32xf32, #tpu.memory_space<vmem>>, vector<1x32xf32>
    %4 = vector.broadcast %3 : vector<1x32xf32> to vector<8x32xf32>
    %5 = arith.addf %2, %4 : vector<8x32xf32>
    %cst_5 = arith.constant 0.000000e+00 : f32
    %6 = vector.broadcast %cst_5 : f32 to vector<8x32xf32>
    %7 = arith.maximumf %5, %6 : vector<8x32xf32>
    %c0_6 = arith.constant 0 : index
    %c0_7 = arith.constant 0 : index
    %8 = vector.load %arg4[%c0_6, %c0_7] : memref<32x32xf32, #tpu.memory_space<vmem>>, vector<32x32xf32>
    %cst_8 = arith.constant dense<0.000000e+00> : vector<8x32xf32>
    %9 = tpu.matmul %7, %8, %cst_8 {dimension_numbers = #tpu.dot_dimension_numbers<[1], [0], [0], [1], [0, 0, 1, 1], [], []>} : vector<8x32xf32>, vector<32x32xf32>, vector<8x32xf32> -> vector<8x32xf32>
    %c0_9 = arith.constant 0 : index
    %c0_10 = arith.constant 0 : index
    %10 = vector.load %arg5[%c0_9, %c0_10] : memref<1x32xf32, #tpu.memory_space<vmem>>, vector<1x32xf32>
    %11 = vector.broadcast %10 : vector<1x32xf32> to vector<8x32xf32>
    %12 = arith.addf %9, %11 : vector<8x32xf32>
    %cst_11 = arith.constant 0.000000e+00 : f32
    %13 = vector.broadcast %cst_11 : f32 to vector<8x32xf32>
    %14 = arith.maximumf %12, %13 : vector<8x32xf32>
    %15 = arith.mulf %14, %14 : vector<8x32xf32>
    %cst_12 = arith.constant dense<0.000000e+00> : vector<8xf32>
    %16 = vector.multi_reduction <add>, %15, %cst_12 [1] : vector<8x32xf32> to vector<8xf32>
    %17 = vector.shape_cast %16 : vector<8xf32> to vector<8x1xf32>
    %cst_13 = arith.constant 1.000000e-24 : f32
    %18 = vector.broadcast %cst_13 : f32 to vector<8x1xf32>
    %19 = arith.maximumf %17, %18 : vector<8x1xf32>
    %20 = math.rsqrt %19 : vector<8x1xf32>
    %21 = vector.broadcast %20 : vector<8x1xf32> to vector<8x32xf32>
    %22 = arith.mulf %14, %21 : vector<8x32xf32>
    %c0_14 = arith.constant 0 : index
    %c0_15 = arith.constant 0 : index
    %23 = vector.load %arg6[%c0_14, %c0_15] : memref<8x32xf32, #tpu.memory_space<vmem>>, vector<8x32xf32>
    tpu.vector_store %arg6[%c0_14, %c0_15], %22 {strides = array<i32>} : memref<8x32xf32, #tpu.memory_space<vmem>>, vector<8x32xf32>,
    return
  }
  func.func @transform_0(%arg0: i32) -> (i32, i32) {
    %c0_i32 = arith.constant 0 : i32
    %c0_i32_0 = arith.constant 0 : i32
    return %arg0, %c0_i32 : i32, i32
  }
  func.func @transform_1(%arg0: i32) -> (i32, i32) {
    %c0_i32 = arith.constant 0 : i32
    %c0_i32_0 = arith.constant 0 : i32
    %c0_i32_1 = arith.constant 0 : i32
    return %c0_i32, %c0_i32_0 : i32, i32
  }
  func.func @transform_2(%arg0: i32) -> (i32, i32) {
    %c0_i32 = arith.constant 0 : i32
    %c0_i32_0 = arith.constant 0 : i32
    %c0_i32_1 = arith.constant 0 : i32
    return %c0_i32, %c0_i32_0 : i32, i32
  }
  func.func @transform_3(%arg0: i32) -> (i32, i32) {
    %c0_i32 = arith.constant 0 : i32
    %c0_i32_0 = arith.constant 0 : i32
    %c0_i32_1 = arith.constant 0 : i32
    return %c0_i32, %c0_i32_0 : i32, i32
  }
  func.func @transform_4(%arg0: i32) -> (i32, i32) {
    %c0_i32 = arith.constant 0 : i32
    %c0_i32_0 = arith.constant 0 : i32
    %c0_i32_1 = arith.constant 0 : i32
    return %c0_i32, %c0_i32_0 : i32, i32
  }
  func.func @transform_5(%arg0: i32) -> (i32, i32) {
    %c0_i32 = arith.constant 0 : i32
    %c0_i32_0 = arith.constant 0 : i32
    return %arg0, %c0_i32 : i32, i32
  }
}

</mosaic_0001>

<llo_original>
// kernel: tpu_custom_call.1
$region0: #{tpu_custom_call.1}
  #allocation0 [shape = 'u32[]', space=smem, size = 0x4, offset = 0x4, fixed_abs, tag = 'smem constant byte address 0x4 - core index']
  #allocation1 [shape = 'u32[144,128]{1,0:T(1,128)}', space=vmem, size = 0x12000, scoped, tag = 'internal scratch']
  %s0 = inlined_call_operand.hbm [shape: f32[8,32], index: 0, kind: input, shape index: {}]
  %s1 = inlined_call_operand.hbm [shape: f32[32,32], index: 1, kind: input, shape index: {}]
  %s2 = inlined_call_operand.vmem [shape: f32[1,32], index: 2, kind: input, shape index: {}]
  %s3 = inlined_call_operand.hbm [shape: f32[32,32], index: 3, kind: input, shape index: {}]
  %s4 = inlined_call_operand.vmem [shape: f32[1,32], index: 4, kind: input, shape index: {}]
  %s5 = inlined_call_operand.hbm [shape: f32[8,32], index: 5, kind: output, shape index: {}]
  %s6 = sld [smem:[#allocation0]]
  $region42: #{tpu_custom_call.1} parent=0
    _
  %s8 = ssub.s32 1, %s6
  %s9 = scalar_select 0, %s8, %s6
  $region1: #{tpu_custom_call.1} parent=0
    #allocation2 [shape = 'u8[4096]{0}', space=vmem, size = 0x1000, scoped, tag = 'input window, operand 0, single buffered']
    #allocation3 [shape = 's32[1]{0}', space=sflag, size = 0x4, scoped, tag = 'scoped memory for tpu_custom_call.1']
    #allocation4 [shape = 's32[1]{0}', space=sflag, size = 0x4, scoped, tag = 'scoped memory for tpu_custom_call.1']
    #allocation5 [shape = 'u8[16384]{0}', space=vmem, size = 0x4000, scoped, tag = 'input window, operand 1, single buffered']
    #allocation6 [shape = 's32[1]{0}', space=sflag, size = 0x4, scoped, tag = 'scoped memory for tpu_custom_call.1']
    #allocation7 [shape = 'u8[16384]{0}', space=vmem, size = 0x4000, scoped, tag = 'input window, operand 3, single buffered']
    #allocation8 [shape = 'u8[4096]{0}', space=vmem, size = 0x1000, scoped, tag = 'output window, operand 0, single buffered']
    %10 = vsyncpa [#allocation3], 0
    %11 = vsyncpa [#allocation6], 0
    %12 = vsyncpa [#allocation4], 0
    // Predicated region
    $region2: #{tpu_custom_call.1} parent=1 // pred_check
      _
    $region3: #{tpu_custom_call.1} parent=1 // pred_check_branch
      %14 = sbr.rel (0) target = $region5
    $region4: #{tpu_custom_call.1} parent=1 // pred_region
      %s16 = ssub.s32 128, 128
      %17 = vsyncadd [#allocation3], %s16
      %s19 = sshll.u32 [#allocation2], 4
      %s20 = int_to_ptr.vmem [resolvable:$true] %s19
      %22 = dma.hbm_to_vmem [thread:$0]  %s0, 128, %s20, [#allocation3]
    $region5: #{tpu_custom_call.1} parent=1 // pred_fallthru
      _
    // Predicated region
    $region6: #{tpu_custom_call.1} parent=1 // pred_check
      _
    $region7: #{tpu_custom_call.1} parent=1 // pred_check_branch
      %24 = sbr.rel (0) target = $region9
    $region8: #{tpu_custom_call.1} parent=1 // pred_region
      %s26 = ssub.s32 512, 512
      %27 = vsyncadd [#allocation6], %s26
      %s28 = sshll.u32 [#allocation5], 4
      %s29 = int_to_ptr.vmem [resolvable:$true] %s28
      %34 = dma.hbm_to_vmem [thread:$0]  %s1, 512, %s29, [#allocation6], 128, 128, 8
    $region9: #{tpu_custom_call.1} parent=1 // pred_fallthru
      _
    // Predicated region
    $region10: #{tpu_custom_call.1} parent=1 // pred_check
      _
    $region11: #{tpu_custom_call.1} parent=1 // pred_check_branch
      %36 = sbr.rel (0) target = $region13
    $region12: #{tpu_custom_call.1} parent=1 // pred_region
      _
    $region13: #{tpu_custom_call.1} parent=1 // pred_fallthru
      _
    // Predicated region
    $region14: #{tpu_custom_call.1} parent=1 // pred_check
      _
    $region15: #{tpu_custom_call.1} parent=1 // pred_check_branch
      %38 = sbr.rel (0) target = $region17
    $region16: #{tpu_custom_call.1} parent=1 // pred_region
      %s40 = ssub.s32 512, 512
      %41 = vsyncadd [#allocation6], %s40
      %s42 = sshll.u32 [#allocation7], 4
      %s43 = int_to_ptr.vmem [resolvable:$true] %s42
      %48 = dma.hbm_to_vmem [thread:$0]  %s3, 512, %s43, [#allocation6], 128, 128, 8
    $region17: #{tpu_custom_call.1} parent=1 // pred_fallthru
      _
    // Predicated region
    $region18: #{tpu_custom_call.1} parent=1 // pred_check
      _
    $region19: #{tpu_custom_call.1} parent=1 // pred_check_branch
      %50 = sbr.rel (0) target = $region21
    $region20: #{tpu_custom_call.1} parent=1 // pred_region
      _
    $region21: #{tpu_custom_call.1} parent=1 // pred_fallthru
      _
    // Predicated region
    $region22: #{tpu_custom_call.1} parent=1 // pred_check
      _
    $region23: #{tpu_custom_call.1} parent=1 // pred_check_branch
      %52 = sbr.rel (0) target = $region25
    $region24: #{tpu_custom_call.1} parent=1 // pred_region
      %53 = dma.done [#allocation3], 128
    $region25: #{tpu_custom_call.1} parent=1 // pred_fallthru
      _
    // Predicated region
    $region26: #{tpu_custom_call.1} parent=1 // pred_check
      _
    $region27: #{tpu_custom_call.1} parent=1 // pred_check_branch
      %55 = sbr.rel (0) target = $region29
    $region28: #{tpu_custom_call.1} parent=1 // pred_region
      %56 = dma.done [#allocation6], 512
    $region29: #{tpu_custom_call.1} parent=1 // pred_fallthru
      _
    // Predicated region
    $region30: #{tpu_custom_call.1} parent=1 // pred_check
      _
    $region31: #{tpu_custom_call.1} parent=1 // pred_check_branch
      %58 = sbr.rel (0) target = $region33
    $region32: #{tpu_custom_call.1} parent=1 // pred_region
      %59 = dma.done [#allocation6], 512
    $region33: #{tpu_custom_call.1} parent=1 // pred_fallthru
      _
    %v60 = vld [vmem:[#allocation2] sm:$0xff]
    %v61 = vld [vmem:[#allocation5] sm:$0xff]
    %v62 = vld [vmem:[#allocation5 + $0x8] sm:$0xff]
    %v63 = vld [vmem:[#allocation5 + $0x10] sm:$0xff]
    %v64 = vld [vmem:[#allocation5 + $0x18] sm:$0xff]
    %v65 = vld [vmem:[%s2] sm:$0x1]
    %v67 = vlaneseq
    %v68 = vshrl.u32 %v67, 7
    %v69 = vsub.s32 0, %v68
    %v70 = vrot.slane %v65, %v69
    %vm72 = vcmask 261120
    %v74 = vsel %vm72, %v60, 0
    %76 = vmatprep.subr.mxu0 0.0
    %77 = vmatpush1.msra.mxu0 %v61
    %78 = vmatprep.subr.mxu0 0.0
    %79 = vmatpush1.msra.mxu0 %v62
    %80 = vmatprep.subr.mxu0 0.0
    %81 = vmatpush1.msra.mxu0 %v63
    %82 = vmatprep.subr.mxu0 0.0
    %83 = vmatpush1.msra.mxu0 %v64
    %84 = vmatprep.subr.mxu0 0.0
    %85 = vmatpush1.msra.mxu0 0.0
    %86 = vmatprep.subr.mxu0 0.0
    %87 = vmatpush1.msra.mxu0 0.0
    %88 = vmatprep.subr.mxu0 0.0
    %89 = vmatpush1.msra.mxu0 0.0
    %90 = vmatprep.subr.mxu0 0.0
    %91 = vmatpush1.msra.mxu0 0.0
    %92 = vmatprep.subr.mxu0 0.0
    %93 = vmatpush1.msra.mxu0 0.0
    %94 = vmatprep.subr.mxu0 0.0
    %95 = vmatpush1.msra.mxu0 0.0
    %96 = vmatprep.subr.mxu0 0.0
    %97 = vmatpush1.msra.mxu0 0.0
    %98 = vmatprep.subr.mxu0 0.0
    %99 = vmatpush1.msra.mxu0 0.0
    %100 = vmatprep.subr.mxu0 0.0
    %101 = vmatpush1.msra.mxu0 0.0
    %102 = vmatprep.subr.mxu0 0.0
    %103 = vmatpush1.msra.mxu0 0.0
    %104 = vmatprep.subr.mxu0 0.0
    %105 = vmatpush1.msra.mxu0 0.0
    %106 = vmatprep.subr.mxu0 0.0
    %107 = vmatpush1.msra.mxu0 0.0
    %108 = vmatprep.subr.mxu0 0.0
    %109 = vmatpush1.msra.mxu0 0.0
    %110 = vmatprep.subr.mxu0 0.0
    %111 = vmatpush1.msra.mxu0 0.0
    %112 = vmatprep.subr.mxu0 0.0
    %113 = vmatpush1.msra.mxu0 0.0
    %114 = vmatprep.subr.mxu0 0.0
    %115 = vmatpush1.msra.mxu0 0.0
    %116 = vmatprep.subr.mxu0 0.0
    %117 = vmatpush1.msra.mxu0 0.0
    %118 = vmatprep.subr.mxu0 0.0
    %119 = vmatpush1.msra.mxu0 0.0
    %120 = vmatprep.subr.mxu0 0.0
    %121 = vmatpush1.msra.mxu0 0.0
    %122 = vmatprep.subr.mxu0 0.0
    %123 = vmatpush1.msra.mxu0 0.0
    %124 = vmatprep.subr.mxu0 0.0
    %125 = vmatpush1.msra.mxu0 0.0
    %126 = vmatprep.subr.mxu0 0.0
    %127 = vmatpush1.msra.mxu0 0.0
    %128 = vmatprep.subr.mxu0 0.0
    %129 = vmatpush1.msra.mxu0 0.0
    %130 = vmatprep.subr.mxu0 0.0
    %131 = vmatpush1.msra.mxu0 0.0
    %132 = vmatprep.subr.mxu0 0.0
    %133 = vmatpush1.msra.mxu0 0.0
    %134 = vmatprep.subr.mxu0 0.0
    %135 = vmatpush1.msra.mxu0 0.0
    %136 = vmatprep.subr.mxu0 0.0
    %137 = vmatpush1.msra.mxu0 0.0
    %138 = vmatprep.subr.mxu0 0.0
    %139 = vmatpush1.msra.mxu0 0.0
    %140 = vmatprep.mubr.f32.mxu0 0.0
    %141 = vmatmul.mubr.f32.gmra.mrb[0].mxu0 %v74
    %v142 = vpop.f32.mrb[0].mxu0
    %v143 = vadd.f32 %v70, %v142
    %v144 = vpop.f32.mrb[0].mxu0
    %145 = vdwg.mxu0
    %v146 = vmax.f32 %v143, 0.0
    %v147 = vld [vmem:[#allocation7] sm:$0xff]
    %v148 = vld [vmem:[#allocation7 + $0x8] sm:$0xff]
    %v149 = vld [vmem:[#allocation7 + $0x10] sm:$0xff]
    %v150 = vld [vmem:[#allocation7 + $0x18] sm:$0xff]
    %v151 = vld [vmem:[%s4] sm:$0x1]
    %v153 = vlaneseq
    %v154 = vshrl.u32 %v153, 7
    %v155 = vsub.s32 0, %v154
    %v156 = vrot.slane %v151, %v155
    %v159 = vsel %vm72, %v146, 0
    %161 = vmatprep.subr.mxu0 0.0
    %162 = vmatpush1.msra.mxu0 %v147
    %163 = vmatprep.subr.mxu0 0.0
    %164 = vmatpush1.msra.mxu0 %v148
    %165 = vmatprep.subr.mxu0 0.0
    %166 = vmatpush1.msra.mxu0 %v149
    %167 = vmatprep.subr.mxu0 0.0
    %168 = vmatpush1.msra.mxu0 %v150
    %169 = vmatprep.subr.mxu0 0.0
    %170 = vmatpush1.msra.mxu0 0.0
    %171 = vmatprep.subr.mxu0 0.0
    %172 = vmatpush1.msra.mxu0 0.0
    %173 = vmatprep.subr.mxu0 0.0
    %174 = vmatpush1.msra.mxu0 0.0
    %175 = vmatprep.subr.mxu0 0.0
    %176 = vmatpush1.msra.mxu0 0.0
    %177 = vmatprep.subr.mxu0 0.0
    %178 = vmatpush1.msra.mxu0 0.0
    %179 = vmatprep.subr.mxu0 0.0
    %180 = vmatpush1.msra.mxu0 0.0
    %181 = vmatprep.subr.mxu0 0.0
    %182 = vmatpush1.msra.mxu0 0.0
    %183 = vmatprep.subr.mxu0 0.0
    %184 = vmatpush1.msra.mxu0 0.0
    %185 = vmatprep.subr.mxu0 0.0
    %186 = vmatpush1.msra.mxu0 0.0
    %187 = vmatprep.subr.mxu0 0.0
    %188 = vmatpush1.msra.mxu0 0.0
    %189 = vmatprep.subr.mxu0 0.0
    %190 = vmatpush1.msra.mxu0 0.0
    %191 = vmatprep.subr.mxu0 0.0
    %192 = vmatpush1.msra.mxu0 0.0
    %193 = vmatprep.subr.mxu0 0.0
    %194 = vmatpush1.msra.mxu0 0.0
    %195 = vmatprep.subr.mxu0 0.0
    %196 = vmatpush1.msra.mxu0 0.0
    %197 = vmatprep.subr.mxu0 0.0
    %198 = vmatpush1.msra.mxu0 0.0
    %199 = vmatprep.subr.mxu0 0.0
    %200 = vmatpush1.msra.mxu0 0.0
    %201 = vmatprep.subr.mxu0 0.0
    %202 = vmatpush1.msra.mxu0 0.0
    %203 = vmatprep.subr.mxu0 0.0
    %204 = vmatpush1.msra.mxu0 0.0
    %205 = vmatprep.subr.mxu0 0.0
    %206 = vmatpush1.msra.mxu0 0.0
    %207 = vmatprep.subr.mxu0 0.0
    %208 = vmatpush1.msra.mxu0 0.0
    %209 = vmatprep.subr.mxu0 0.0
    %210 = vmatpush1.msra.mxu0 0.0
    %211 = vmatprep.subr.mxu0 0.0
    %212 = vmatpush1.msra.mxu0 0.0
    %213 = vmatprep.subr.mxu0 0.0
    %214 = vmatpush1.msra.mxu0 0.0
    %215 = vmatprep.subr.mxu0 0.0
    %216 = vmatpush1.msra.mxu0 0.0
    %217 = vmatprep.subr.mxu0 0.0
    %218 = vmatpush1.msra.mxu0 0.0
    %219 = vmatprep.subr.mxu0 0.0
    %220 = vmatpush1.msra.mxu0 0.0
    %221 = vmatprep.subr.mxu0 0.0
    %222 = vmatpush1.msra.mxu0 0.0
    %223 = vmatprep.subr.mxu0 0.0
    %224 = vmatpush1.msra.mxu0 0.0
    %225 = vmatprep.mubr.f32.mxu0 0.0
    %226 = vmatmul.mubr.f32.gmra.mrb[0].mxu0 %v159
    %v227 = vpop.f32.mrb[0].mxu0
    %v228 = vadd.f32 %v156, %v227
    %v229 = vpop.f32.mrb[0].mxu0
    %230 = vdwg.mxu0
    %v231 = vmax.f32 %v228, 0.0
    %v232 = vmul.f32 %v231, %v231
    %v233 = vsel %vm72, %v232, 0.0
    %234 = vadd.xlane.f32.xlu0 %v233
    %v235 = vpop.xlane.xlu0 %234
    %v236 = vmax.f32 %v235, 1e-24
    %v237 = vrsqrt.pop %v236
    %v238 = vmul.f32 %v231, %v237
    %239 = vst.msk [vmem:[#allocation8] sm:$0xff] %vm72, %v238
    // Predicated region
    $region34: #{tpu_custom_call.1} parent=1 // pred_check
      _
    $region35: #{tpu_custom_call.1} parent=1 // pred_check_branch
      %241 = sbr.rel (0) target = $region37
    $region36: #{tpu_custom_call.1} parent=1 // pred_region
      %s243 = ssub.s32 128, 128
      %244 = vsyncadd [#allocation4], %s243
      %s246 = sshll.u32 [#allocation8], 4
      %s247 = int_to_ptr.vmem [resolvable:$true] %s246
      %249 = dma.vmem_to_hbm [thread:$0]  %s247, 128, %s5, [#allocation4]
    $region37: #{tpu_custom_call.1} parent=1 // pred_fallthru
      _
    // Predicated region
    $region38: #{tpu_custom_call.1} parent=1 // pred_check
      _
    $region39: #{tpu_custom_call.1} parent=1 // pred_check_branch
      %251 = sbr.rel (0) target = $region41
    $region40: #{tpu_custom_call.1} parent=1 // pred_region
      %252 = dma.done [#allocation4], 128
    $region41: #{tpu_custom_call.1} parent=1 // pred_fallthru
      _
    %253 = vsyncpa [#allocation3], 1
    %254 = vsyncpa [#allocation6], 1
    %255 = vsyncpa [#allocation4], 1

</llo_original>
